<compile_context>
chip_gen: v7x
topology: tpu7x:2x2x1
jax: 0.10.0
libtpu: 0.0.40
codegen_flags: <defaults>
</compile_context>

<pallas_src>
import math
from functools import partial

import jax
import jax.numpy as jnp
from jax.experimental import pallas as pl
from jax.experimental.pallas import tpu as pltpu

BN_EPS = 1e-5


def _distill_level_kernel(s_ref, w_ref, g_ref, b_ref, m_ref, t_ref,
                          out_ref,
                          mean_sc, m2_sc, scale_sc, loss_sc,
                          *maybe_cache,
                          n_blk, num_hw_tiles, num_steps, t_hw, lw, use_cache):
    """Two-pass (phase 0: BN stats, phase 1: margin loss) over one feature level.

    Grid = (phase, N/n_blk, HW/t_hw); phase MUST be the outermost (slowest) axis.
    """
    y_cache = maybe_cache[0] if maybe_cache else None

    phase = pl.program_id(0)
    step = pl.program_id(1) * num_hw_tiles + pl.program_id(2)
    is_first = step == 0
    is_last = step == num_steps - 1

    w = w_ref[...]                                   # (Ct, Cs) bf16, tiny

    # ---------------- phase 0: BatchNorm batch statistics -------------------
    @pl.when(phase == 0)
    def _stats_pass():
        @pl.when(is_first)
        def _init():
            mean_sc[...] = jnp.zeros_like(mean_sc)
            m2_sc[...] = jnp.zeros_like(m2_sc)
            loss_sc[...] = jnp.zeros_like(loss_sc)

        inv_cols = 1.0 / float(t_hw)
        for b in range(n_blk):                       # static unroll (n_blk small)
            # connector Conv2d(Cs->Ct, k=1, bias=False): one MXU matmul,
            # HW on the 128-lane axis; bf16 operands, f32 accumulation.
            y = jnp.dot(w, s_ref[b].astype(jnp.bfloat16),
                        preferred_element_type=jnp.float32)       # (Ct, t_hw)
            if use_cache:
                y_cache[step * n_blk + b] = y        # f32 cache -> bit-exact reuse

            # per-sub-tile mean / centered second moment, then Chan/Welford
            # combine into the running (mean, M2) -- numerically stable.
            sub_mean = jnp.sum(y, axis=-1, keepdims=True) * inv_cols   # (Ct,1)
            centered = y - sub_mean
            sub_m2 = jnp.sum(centered * centered, axis=-1, keepdims=True)
            j = (step * n_blk + b).astype(jnp.float32)   # sub-tiles already folded
            delta = sub_mean - mean_sc[...]
            mean_sc[...] = mean_sc[...] + delta / (j + 1.0)
            m2_sc[...] = (m2_sc[...] + sub_m2
                          + (delta * delta) * (float(t_hw) * j / (j + 1.0)))

        @pl.when(is_last)
        def _finalize_stats():
            # biased variance (PyTorch training-mode BN normalization), then
            # fold the affine:  y_bn = y*scale + shift.
            total = float(num_steps * n_blk * t_hw)
            var = m2_sc[...] * (1.0 / total)
            istd = jax.lax.rsqrt(var + BN_EPS)
            scale = istd * g_ref[...]
            scale_sc[...] = scale
            mean_sc[...] = b_ref[...] - mean_sc[...] * scale     # shift

    # ---------------- phase 1: normalize + margin-masked MSE ----------------
    @pl.when(phase == 1)
    def _loss_pass():
        scale = scale_sc[...]                        # istd * gamma      (Ct,1)
        shift = mean_sc[...]                         # beta - mean*scale (Ct,1)
        mrg = m_ref[...]                             # (Ct,1)

        partial_acc = None
        for b in range(n_blk):
            if use_cache:
                y = y_cache[step * n_blk + b]        # (Ct, t_hw) f32
            else:
                y = jnp.dot(w, s_ref[b].astype(jnp.bfloat16),
                            preferred_element_type=jnp.float32)
            y_bn = y * scale + shift
            t = t_ref[b]                             # (Ct, t_hw) f32
            tgt = jnp.maximum(t, mrg)
            diff = y_bn - tgt
            # keep = (y_bn > tgt) | (tgt > 0)  ==  d = tgt>0 ? diff : max(diff,0)
            d = jnp.where(tgt > 0.0, diff, jnp.maximum(diff, 0.0))
            d2 = d * d
            # fold lane chunks (128-aligned static slices) with VALU adds so the
            # scratch RMW is only (Ct, lw) per tile.
            if t_hw == lw:
                folded = d2
            else:
                folded = d2[:, :lw]
                for c in range(1, t_hw // lw):
                    folded = folded + d2[:, c * lw:(c + 1) * lw]
            partial_acc = folded if partial_acc is None else partial_acc + folded

        loss_sc[...] = loss_sc[...] + partial_acc

        @pl.when(is_last)
        def _finalize_loss():
            out_ref[...] = jnp.sum(loss_sc[...], keepdims=True)   # (1,1)


def _choose_tiling(n, cs, ct, hw, *, stream_budget=10 << 20, n_blk_cap=8):
    """Pick (n_blk, t_hw): exact divisors only (keeps the Welford combine exact),
    maximizing bytes per grid step under a VMEM budget."""
    if hw % 128 == 0:
        lane_tiles = sorted({d for d in range(128, hw + 1, 128) if hw % d == 0},
                            reverse=True)
    else:
        # full-extent block (allowed when equal to the array dim); for very large
        # non-128-divisible HW this may need a larger vmem limit.
        lane_tiles = [hw]
    n_opts = sorted([d for d in range(1, min(n, n_blk_cap) + 1) if n % d == 0],
                    reverse=True)

    def step_bytes(nb, th):
        # double-buffered f32 student + teacher blocks, plus f32 temporaries.
        return 2 * 4 * nb * (cs + ct) * th + 4 * 4 * nb * ct * th

    best, best_sz = (1, lane_tiles[-1]), -1
    for nb in n_opts:
        for th in lane_tiles:
            if step_bytes(nb, th) <= stream_budget and nb * th > best_sz:
                best, best_sz = (nb, th), nb * th
    return best


def distill_level_loss(s_nchw, w_oi, gamma, beta, margin, t_nchw):
    """One level: connector (conv1x1 + BN, training stats) -> distillation loss.

    s_nchw: [N, Cs, H, W] student pre-ReLU feature (f32, streamed as-is)
    w_oi  : [Ct, Cs]      connector conv weight (PyTorch [out,in,1,1] squeezed)
    gamma, beta, margin: [Ct, 1]
    t_nchw: [N, Ct, H, W] teacher pre-ReLU feature (f32, streamed as-is)
    """
    n, cs, h, wsp = s_nchw.shape
    ct = t_nchw.shape[1]
    hw = h * wsp

    n_blk, t_hw = _choose_tiling(n, cs, ct, hw)
    num_hw = hw // t_hw
    nb_steps = n // n_blk
    num_steps = nb_steps * num_hw
    lw = 128 if (t_hw % 128 == 0) else t_hw

    # single-pass gate: cache f32 y = W@s for the whole level when it fits VMEM.
    cache_rows = num_steps * n_blk
    cache_bytes = 4 * cache_rows * ct * t_hw
    use_cache = cache_bytes <= (6 << 20)

    # Free reshapes (contiguous trailing dims); NO dtype cast pre-pass.
    s3 = s_nchw.reshape(n, cs, hw)
    t3 = t_nchw.reshape(n, ct, hw)
    w_b = w_oi.astype(jnp.bfloat16)

    kernel = partial(_distill_level_kernel,
                     n_blk=n_blk, num_hw_tiles=num_hw, num_steps=num_steps,
                     t_hw=t_hw, lw=lw, use_cache=use_cache)

    student_passes = 1 if use_cache else 2
    flops = 2 * student_passes * n * hw * cs * ct
    bytes_acc = (4 * student_passes * n * cs * hw       # student f32
                 + 4 * n * ct * hw                      # teacher f32 (loss pass)
                 + 2 * ct * cs + 4 * 3 * ct + 4)        # weight / BN / margin / out

    if use_cache:
        # park the student on block 0 during the loss pass (cache is used instead)
        s_index_map = lambda p, i, j: ((1 - p) * i, 0, (1 - p) * j)
    else:
        s_index_map = lambda p, i, j: (i, 0, j)

    scratch = [
        pltpu.VMEM((ct, 1), jnp.float32),      # running mean -> BN shift
        pltpu.VMEM((ct, 1), jnp.float32),      # running centered M2
        pltpu.VMEM((ct, 1), jnp.float32),      # BN scale = istd*gamma
        pltpu.VMEM((ct, lw), jnp.float32),     # folded loss accumulator
    ]
    if use_cache:
        scratch.append(pltpu.VMEM((cache_rows, ct, t_hw), jnp.float32))

    out = pl.pallas_call(
        kernel,
        out_shape=jax.ShapeDtypeStruct((1, 1), jnp.float32),
        grid=(2, nb_steps, num_hw),
        in_specs=[
            pl.BlockSpec((n_blk, cs, t_hw), s_index_map),              # student
            pl.BlockSpec((ct, cs), lambda p, i, j: (0, 0)),            # conv weight
            pl.BlockSpec((ct, 1), lambda p, i, j: (0, 0)),             # BN gamma
            pl.BlockSpec((ct, 1), lambda p, i, j: (0, 0)),             # BN beta
            pl.BlockSpec((ct, 1), lambda p, i, j: (0, 0)),             # margin
            # teacher: parked on block 0 during the stats pass (no re-DMA),
            # streamed per-tile only in the loss pass.
            pl.BlockSpec((n_blk, ct, t_hw), lambda p, i, j: (p * i, 0, p * j)),
        ],
        out_specs=pl.BlockSpec((1, 1), lambda p, i, j: (0, 0)),
        scratch_shapes=scratch,
        compiler_params=pltpu.CompilerParams(
            dimension_semantics=("arbitrary", "arbitrary", "arbitrary"),
            vmem_limit_bytes=32 * 1024 * 1024),
        cost_estimate=pl.CostEstimate(flops=int(flops), transcendentals=int(ct),
                                      bytes_accessed=int(bytes_acc)),
    )(s3, w_b, gamma, beta, margin, t3)
    return out[0, 0]


def margin_from_bn(bn_weight, bn_bias):
    """get_margin_from_BN: closed-form margin from teacher BN (host-side scalar glue)."""
    margins = []
    for s, m in zip(list(bn_weight), list(bn_bias)):
        s = abs(float(s))
        m = float(m)
        cdf = 0.5 * (1.0 + math.erf((-m / s) / math.sqrt(2.0)))
        if cdf > 0.001:
            margins.append(-s * math.exp(-(m / s) ** 2 / 2.0)
                           / math.sqrt(2.0 * math.pi) / cdf + m)
        else:
            margins.append(-3.0 * s)
    return jnp.array(margins, dtype=jnp.float32)


def ref_level_loss(s_nchw, w_oi, gamma, beta, margin, t_nchw):
    """Pure-JAX reference (bf16-rounded matmul operands, f32 math elsewhere)."""
    n, cs, h, wsp = s_nchw.shape
    ct = t_nchw.shape[1]
    s3 = s_nchw.reshape(n, cs, h * wsp).astype(jnp.bfloat16).astype(jnp.float32)
    t3 = t_nchw.reshape(n, ct, h * wsp)
    w = w_oi.astype(jnp.bfloat16).astype(jnp.float32)
    y = jnp.einsum("oc,ncx->nox", w, s3)                       # [N, Ct, HW]
    mean = y.mean(axis=(0, 2), keepdims=True)
    var = ((y - mean) ** 2).mean(axis=(0, 2), keepdims=True)
    y_bn = (y - mean) * jax.lax.rsqrt(var + BN_EPS) * gamma[None] + beta[None]
    tgt = jnp.maximum(t3, margin[None])
    keep = jnp.logical_or(y_bn > tgt, tgt > 0.0).astype(jnp.float32)
    return jnp.sum((y_bn - tgt) ** 2 * keep)


if __name__ == "__main__":
    key = jax.random.PRNGKey(0)
    N = 2
    # per-level (s_channel, t_channel, H, W) — stand-in for the feature pyramids
    level_cfg = [(4, 8, 16, 16), (8, 16, 8, 8)]
    feat_num = len(level_cfg)

    # TODO(synk): t_net.forward_feature / s_net.extract_feature are external
    # networks not provided; their pre-ReLU feature maps are synthesized here.
    # TODO(synk): pepper_and_salt corrupts the HxWx3 input image with Python
    # `random` on the host (data glue); no Pallas equivalent, skipped.

    keys = jax.random.split(key, 5 * feat_num + 1)
    s_feats, t_feats = [], []
    conv_ws, gammas, betas, margins = [], [], [], []
    for i, (cs, ct, h, wsp) in enumerate(level_cfg):
        k_s, k_t, k_w, k_bnw, k_bnb = keys[5 * i:5 * i + 5]
        s_feats.append(jax.random.normal(k_s, (N, cs, h, wsp), jnp.float32))
        t_feats.append(jax.random.normal(k_t, (N, ct, h, wsp), jnp.float32))
        # Conv2d(cs -> ct, k=1, bias=False), init normal(0, sqrt(2/(1*1*ct)))
        std = math.sqrt(2.0 / ct)
        conv_ws.append(std * jax.random.normal(k_w, (ct, cs), jnp.float32))  # [Ct, Cs]
        # connector BatchNorm2d init: weight=1, bias=0
        gammas.append(jnp.ones((ct, 1), jnp.float32))
        betas.append(jnp.zeros((ct, 1), jnp.float32))
        # teacher BN-before-ReLU params (deterministic synthetic) -> margin_i
        t_bn_w = 0.5 + 0.5 * jax.random.uniform(k_bnw, (ct,), jnp.float32)
        t_bn_b = jax.random.normal(k_bnb, (ct,), jnp.float32)
        margins.append(margin_from_bn(t_bn_w, t_bn_b)[:, None])              # [Ct, 1]

    # forward: loss_distill = sum_i  dist_loss_i / 2**(feat_num - i - 1)
    loss_distill = jnp.float32(0.0)
    loss_ref = jnp.float32(0.0)
    for i in range(feat_num):
        li = distill_level_loss(s_feats[i], conv_ws[i], gammas[i], betas[i],
                                margins[i], t_feats[i])
        loss_distill = loss_distill + li / (2 ** (feat_num - i - 1))
        loss_ref = loss_ref + ref_level_loss(
            s_feats[i], conv_ws[i], gammas[i], betas[i], margins[i], t_feats[i]
        ) / (2 ** (feat_num - i - 1))

    # synthetic student logits standing in for s_net's classification output
    s_out = jax.random.normal(keys[-1], (N, 10), jnp.float32)

    loss_distill = jax.block_until_ready(loss_distill)
    jax.block_until_ready(s_out)

    assert jnp.isfinite(loss_distill)
    assert jnp.allclose(loss_distill, loss_ref, rtol=1e-2, atol=1e-2), (
        float(loss_distill), float(loss_ref))
    print("KERNEL_OK")
</pallas_src>

<mosaic_0001>
module attributes {stable_mosaic.version = 11 : i64} {
  func.func @_distill_level_kernel(%arg0: i32, %arg1: i32, %arg2: i32, %arg3: memref<2x4x256xf32, #tpu.memory_space<vmem>>, %arg4: memref<8x4xbf16, #tpu.memory_space<vmem>>, %arg5: memref<8x1xf32, #tpu.memory_space<vmem>>, %arg6: memref<8x1xf32, #tpu.memory_space<vmem>>, %arg7: memref<8x1xf32, #tpu.memory_space<vmem>>, %arg8: memref<2x8x256xf32, #tpu.memory_space<vmem>>, %arg9: memref<1x1xf32, #tpu.memory_space<vmem>>, %arg10: memref<8x1xf32, #tpu.memory_space<vmem>>, %arg11: memref<8x1xf32, #tpu.memory_space<vmem>>, %arg12: memref<8x1xf32, #tpu.memory_space<vmem>>, %arg13: memref<8x128xf32, #tpu.memory_space<vmem>>, %arg14: memref<2x8x256xf32, #tpu.memory_space<vmem>>) attributes {dimension_semantics = [#tpu.dimension_semantics<arbitrary>, #tpu.dimension_semantics<arbitrary>, #tpu.dimension_semantics<arbitrary>], iteration_bounds = array<i64: 2, 1, 1>, scalar_prefetch = 0 : i64, scratch_operands = 5 : i64, tpu.core_type = #tpu.core_type<tc>, window_params = [{transform_indices = @transform_0, window_bounds = array<i64: 2, 4, 256>}, {pipeline_mode = #tpu.pipeline_mode<synchronous>, transform_indices = @transform_1, window_bounds = array<i64: 8, 4>}, {pipeline_mode = #tpu.pipeline_mode<synchronous>, transform_indices = @transform_2, window_bounds = array<i64: 8, 1>}, {pipeline_mode = #tpu.pipeline_mode<synchronous>, transform_indices = @transform_3, window_bounds = array<i64: 8, 1>}, {pipeline_mode = #tpu.pipeline_mode<synchronous>, transform_indices = @transform_4, window_bounds = array<i64: 8, 1>}, {transform_indices = @transform_5, window_bounds = array<i64: 2, 8, 256>}, {pipeline_mode = #tpu.pipeline_mode<synchronous>, transform_indices = @transform_6, window_bounds = array<i64: 1, 1>}]} {
    %c1_i32 = arith.constant 1 : i32
    %0 = arith.muli %arg1, %c1_i32 : i32
    %1 = arith.addi %0, %arg2 : i32
    %c0_i32 = arith.constant 0 : i32
    %2 = arith.cmpi eq, %1, %c0_i32 : i32
    %c0_i32_0 = arith.constant 0 : i32
    %3 = arith.cmpi eq, %1, %c0_i32_0 : i32
    %c0 = arith.constant 0 : index
    %c0_1 = arith.constant 0 : index
    %4 = vector.load %arg4[%c0, %c0_1] : memref<8x4xbf16, #tpu.memory_space<vmem>>, vector<8x4xbf16>
    %c0_i32_2 = arith.constant 0 : i32
    %5 = arith.cmpi eq, %arg0, %c0_i32_2 : i32
    %6 = arith.extui %5 : i1 to i32
    %c0_i32_3 = arith.constant 0 : i32
    %7 = arith.cmpi ne, %6, %c0_i32_3 : i32
    scf.if %7 {
      %11 = arith.extui %2 : i1 to i32
      %c0_i32_6 = arith.constant 0 : i32
      %12 = arith.cmpi ne, %11, %c0_i32_6 : i32
      scf.if %12 {
        %cst_57 = arith.constant 0.000000e+00 : f32
        %95 = vector.broadcast %cst_57 : f32 to vector<8x1xf32>
        %c0_58 = arith.constant 0 : index
        %c0_59 = arith.constant 0 : index
        %96 = vector.load %arg10[%c0_58, %c0_59] : memref<8x1xf32, #tpu.memory_space<vmem>>, vector<8x1xf32>
        tpu.vector_store %arg10[%c0_58, %c0_59], %95 {strides = array<i32>} : memref<8x1xf32, #tpu.memory_space<vmem>>, vector<8x1xf32>,
        %cst_60 = arith.constant 0.000000e+00 : f32
        %97 = vector.broadcast %cst_60 : f32 to vector<8x1xf32>
        %c0_61 = arith.constant 0 : index
        %c0_62 = arith.constant 0 : index
        %98 = vector.load %arg11[%c0_61, %c0_62] : memref<8x1xf32, #tpu.memory_space<vmem>>, vector<8x1xf32>
        tpu.vector_store %arg11[%c0_61, %c0_62], %97 {strides = array<i32>} : memref<8x1xf32, #tpu.memory_space<vmem>>, vector<8x1xf32>,
        %cst_63 = arith.constant 0.000000e+00 : f32
        %99 = vector.broadcast %cst_63 : f32 to vector<8x128xf32>
        %c0_64 = arith.constant 0 : index
        %c0_65 = arith.constant 0 : index
        %100 = vector.load %arg13[%c0_64, %c0_65] : memref<8x128xf32, #tpu.memory_space<vmem>>, vector<8x128xf32>
        tpu.vector_store %arg13[%c0_64, %c0_65], %99 {strides = array<i32>} : memref<8x128xf32, #tpu.memory_space<vmem>>, vector<8x128xf32>,
      } else {
      }
      %c0_7 = arith.constant 0 : index
      %c0_8 = arith.constant 0 : index
      %c0_9 = arith.constant 0 : index
      %13 = vector.load %arg3[%c0_7, %c0_8, %c0_9] : memref<2x4x256xf32, #tpu.memory_space<vmem>>, vector<1x4x256xf32>
      %14 = vector.shape_cast %13 : vector<1x4x256xf32> to vector<4x256xf32>
      %15 = arith.truncf %14 : vector<4x256xf32> to vector<4x256xbf16>
      %cst = arith.constant dense<0.000000e+00> : vector<8x256xf32>
      %16 = tpu.matmul %4, %15, %cst {dimension_numbers = #tpu.dot_dimension_numbers<[1], [0], [0], [1], [0, 0, 1, 1], [], []>} : vector<8x4xbf16>, vector<4x256xbf16>, vector<8x256xf32> -> vector<8x256xf32>
      %c2_i32 = arith.constant 2 : i32
      %17 = arith.muli %1, %c2_i32 : i32
      %c0_i32_10 = arith.constant 0 : i32
      %18 = arith.addi %17, %c0_i32_10 : i32
      %19 = arith.index_cast %18 : i32 to index
      %c0_11 = arith.constant 0 : index
      %c0_12 = arith.constant 0 : index
      %20 = vector.load %arg14[%19, %c0_11, %c0_12] : memref<2x8x256xf32, #tpu.memory_space<vmem>>, vector<1x8x256xf32>
      %21 = vector.shape_cast %20 : vector<1x8x256xf32> to vector<8x256xf32>
      %22 = vector.shape_cast %16 : vector<8x256xf32> to vector<1x8x256xf32>
      tpu.vector_store %arg14[%19, %c0_11, %c0_12], %22 {strides = array<i32>} : memref<2x8x256xf32, #tpu.memory_space<vmem>>, vector<1x8x256xf32>,
      %cst_13 = arith.constant dense<0.000000e+00> : vector<8xf32>
      %23 = vector.multi_reduction <add>, %16, %cst_13 [1] : vector<8x256xf32> to vector<8xf32>
      %24 = vector.shape_cast %23 : vector<8xf32> to vector<8x1xf32>
      %cst_14 = arith.constant 3.906250e-03 : f32
      %25 = vector.broadcast %cst_14 : f32 to vector<8x1xf32>
      %26 = arith.mulf %24, %25 : vector<8x1xf32>
      %27 = vector.broadcast %26 : vector<8x1xf32> to vector<8x256xf32>
      %28 = arith.subf %16, %27 : vector<8x256xf32>
      %29 = arith.mulf %28, %28 : vector<8x256xf32>
      %cst_15 = arith.constant dense<0.000000e+00> : vector<8xf32>
      %30 = vector.multi_reduction <add>, %29, %cst_15 [1] : vector<8x256xf32> to vector<8xf32>
      %31 = vector.shape_cast %30 : vector<8xf32> to vector<8x1xf32>
      %c2_i32_16 = arith.constant 2 : i32
      %32 = arith.muli %1, %c2_i32_16 : i32
      %c0_i32_17 = arith.constant 0 : i32
      %33 = arith.addi %32, %c0_i32_17 : i32
      %34 = arith.sitofp %33 : i32 to f32
      %c0_18 = arith.constant 0 : index
      %c0_19 = arith.constant 0 : index
      %35 = vector.load %arg10[%c0_18, %c0_19] : memref<8x1xf32, #tpu.memory_space<vmem>>, vector<8x1xf32>
      %36 = arith.subf %26, %35 : vector<8x1xf32>
      %c0_20 = arith.constant 0 : index
      %c0_21 = arith.constant 0 : index
      %37 = vector.load %arg10[%c0_20, %c0_21] : memref<8x1xf32, #tpu.memory_space<vmem>>, vector<8x1xf32>
      %cst_22 = arith.constant 1.000000e+00 : f32
      %38 = arith.addf %34, %cst_22 : f32
      %39 = vector.broadcast %38 : f32 to vector<8x1xf32>
      %40 = arith.divf %36, %39 : vector<8x1xf32>
      %41 = arith.addf %37, %40 : vector<8x1xf32>
      %c0_23 = arith.constant 0 : index
      %c0_24 = arith.constant 0 : index
      %42 = vector.load %arg10[%c0_23, %c0_24] : memref<8x1xf32, #tpu.memory_space<vmem>>, vector<8x1xf32>
      tpu.vector_store %arg10[%c0_23, %c0_24], %41 {strides = array<i32>} : memref<8x1xf32, #tpu.memory_space<vmem>>, vector<8x1xf32>,
      %c0_25 = arith.constant 0 : index
      %c0_26 = arith.constant 0 : index
      %43 = vector.load %arg11[%c0_25, %c0_26] : memref<8x1xf32, #tpu.memory_space<vmem>>, vector<8x1xf32>
      %44 = arith.addf %43, %31 : vector<8x1xf32>
      %45 = arith.mulf %36, %36 : vector<8x1xf32>
      %cst_27 = arith.constant 2.560000e+02 : f32
      %46 = arith.mulf %cst_27, %34 : f32
      %cst_28 = arith.constant 1.000000e+00 : f32
      %47 = arith.addf %34, %cst_28 : f32
      %48 = arith.divf %46, %47 : f32
      %49 = vector.broadcast %48 : f32 to vector<8x1xf32>
      %50 = arith.mulf %45, %49 : vector<8x1xf32>
      %51 = arith.addf %44, %50 : vector<8x1xf32>
      %c0_29 = arith.constant 0 : index
      %c0_30 = arith.constant 0 : index
      %52 = vector.load %arg11[%c0_29, %c0_30] : memref<8x1xf32, #tpu.memory_space<vmem>>, vector<8x1xf32>
      tpu.vector_store %arg11[%c0_29, %c0_30], %51 {strides = array<i32>} : memref<8x1xf32, #tpu.memory_space<vmem>>, vector<8x1xf32>,
      %c1 = arith.constant 1 : index
      %c0_31 = arith.constant 0 : index
      %c0_32 = arith.constant 0 : index
      %53 = vector.load %arg3[%c1, %c0_31, %c0_32] : memref<2x4x256xf32, #tpu.memory_space<vmem>>, vector<1x4x256xf32>
      %54 = vector.shape_cast %53 : vector<1x4x256xf32> to vector<4x256xf32>
      %55 = arith.truncf %54 : vector<4x256xf32> to vector<4x256xbf16>
      %cst_33 = arith.constant dense<0.000000e+00> : vector<8x256xf32>
      %56 = tpu.matmul %4, %55, %cst_33 {dimension_numbers = #tpu.dot_dimension_numbers<[1], [0], [0], [1], [0, 0, 1, 1], [], []>} : vector<8x4xbf16>, vector<4x256xbf16>, vector<8x256xf32> -> vector<8x256xf32>
      %c2_i32_34 = arith.constant 2 : i32
      %57 = arith.muli %1, %c2_i32_34 : i32
      %c1_i32_35 = arith.constant 1 : i32
      %58 = arith.addi %57, %c1_i32_35 : i32
      %59 = arith.index_cast %58 : i32 to index
      %c0_36 = arith.constant 0 : index
      %c0_37 = arith.constant 0 : index
      %60 = vector.load %arg14[%59, %c0_36, %c0_37] : memref<2x8x256xf32, #tpu.memory_space<vmem>>, vector<1x8x256xf32>
      %61 = vector.shape_cast %60 : vector<1x8x256xf32> to vector<8x256xf32>
      %62 = vector.shape_cast %56 : vector<8x256xf32> to vector<1x8x256xf32>
      tpu.vector_store %arg14[%59, %c0_36, %c0_37], %62 {strides = array<i32>} : memref<2x8x256xf32, #tpu.memory_space<vmem>>, vector<1x8x256xf32>,
      %cst_38 = arith.constant dense<0.000000e+00> : vector<8xf32>
      %63 = vector.multi_reduction <add>, %56, %cst_38 [1] : vector<8x256xf32> to vector<8xf32>
      %64 = vector.shape_cast %63 : vector<8xf32> to vector<8x1xf32>
      %cst_39 = arith.constant 3.906250e-03 : f32
      %65 = vector.broadcast %cst_39 : f32 to vector<8x1xf32>
      %66 = arith.mulf %64, %65 : vector<8x1xf32>
      %67 = vector.broadcast %66 : vector<8x1xf32> to vector<8x256xf32>
      %68 = arith.subf %56, %67 : vector<8x256xf32>
      %69 = arith.mulf %68, %68 : vector<8x256xf32>
      %cst_40 = arith.constant dense<0.000000e+00> : vector<8xf32>
      %70 = vector.multi_reduction <add>, %69, %cst_40 [1] : vector<8x256xf32> to vector<8xf32>
      %71 = vector.shape_cast %70 : vector<8xf32> to vector<8x1xf32>
      %c2_i32_41 = arith.constant 2 : i32
      %72 = arith.muli %1, %c2_i32_41 : i32
      %c1_i32_42 = arith.constant 1 : i32
      %73 = arith.addi %72, %c1_i32_42 : i32
      %74 = arith.sitofp %73 : i32 to f32
      %c0_43 = arith.constant 0 : index
      %c0_44 = arith.constant 0 : index
      %75 = vector.load %arg10[%c0_43, %c0_44] : memref<8x1xf32, #tpu.memory_space<vmem>>, vector<8x1xf32>
      %76 = arith.subf %66, %75 : vector<8x1xf32>
      %c0_45 = arith.constant 0 : index
      %c0_46 = arith.constant 0 : index
      %77 = vector.load %arg10[%c0_45, %c0_46] : memref<8x1xf32, #tpu.memory_space<vmem>>, vector<8x1xf32>
      %cst_47 = arith.constant 1.000000e+00 : f32
      %78 = arith.addf %74, %cst_47 : f32
      %79 = vector.broadcast %78 : f32 to vector<8x1xf32>
      %80 = arith.divf %76, %79 : vector<8x1xf32>
      %81 = arith.addf %77, %80 : vector<8x1xf32>
      %c0_48 = arith.constant 0 : index
      %c0_49 = arith.constant 0 : index
      %82 = vector.load %arg10[%c0_48, %c0_49] : memref<8x1xf32, #tpu.memory_space<vmem>>, vector<8x1xf32>
      tpu.vector_store %arg10[%c0_48, %c0_49], %81 {strides = array<i32>} : memref<8x1xf32, #tpu.memory_space<vmem>>, vector<8x1xf32>,
      %c0_50 = arith.constant 0 : index
      %c0_51 = arith.constant 0 : index
      %83 = vector.load %arg11[%c0_50, %c0_51] : memref<8x1xf32, #tpu.memory_space<vmem>>, vector<8x1xf32>
      %84 = arith.addf %83, %71 : vector<8x1xf32>
      %85 = arith.mulf %76, %76 : vector<8x1xf32>
      %cst_52 = arith.constant 2.560000e+02 : f32
      %86 = arith.mulf %cst_52, %74 : f32
      %cst_53 = arith.constant 1.000000e+00 : f32
      %87 = arith.addf %74, %cst_53 : f32
      %88 = arith.divf %86, %87 : f32
      %89 = vector.broadcast %88 : f32 to vector<8x1xf32>
      %90 = arith.mulf %85, %89 : vector<8x1xf32>
      %91 = arith.addf %84, %90 : vector<8x1xf32>
      %c0_54 = arith.constant 0 : index
      %c0_55 = arith.constant 0 : index
      %92 = vector.load %arg11[%c0_54, %c0_55] : memref<8x1xf32, #tpu.memory_space<vmem>>, vector<8x1xf32>
      tpu.vector_store %arg11[%c0_54, %c0_55], %91 {strides = array<i32>} : memref<8x1xf32, #tpu.memory_space<vmem>>, vector<8x1xf32>,
      %93 = arith.extui %3 : i1 to i32
      %c0_i32_56 = arith.constant 0 : i32
      %94 = arith.cmpi ne, %93, %c0_i32_56 : i32
      scf.if %94 {
        %c0_57 = arith.constant 0 : index
        %c0_58 = arith.constant 0 : index
        %95 = vector.load %arg11[%c0_57, %c0_58] : memref<8x1xf32, #tpu.memory_space<vmem>>, vector<8x1xf32>
        %cst_59 = arith.constant 0.001953125 : f32
        %96 = vector.broadcast %cst_59 : f32 to vector<8x1xf32>
        %97 = arith.mulf %95, %96 : vector<8x1xf32>
        %cst_60 = arith.constant 9.99999974E-6 : f32
        %98 = vector.broadcast %cst_60 : f32 to vector<8x1xf32>
        %99 = arith.addf %97, %98 : vector<8x1xf32>
        %100 = math.rsqrt %99 : vector<8x1xf32>
        %c0_61 = arith.constant 0 : index
        %c0_62 = arith.constant 0 : index
        %101 = vector.load %arg5[%c0_61, %c0_62] : memref<8x1xf32, #tpu.memory_space<vmem>>, vector<8x1xf32>
        %102 = arith.mulf %100, %101 : vector<8x1xf32>
        %c0_63 = arith.constant 0 : index
        %c0_64 = arith.constant 0 : index
        %103 = vector.load %arg12[%c0_63, %c0_64] : memref<8x1xf32, #tpu.memory_space<vmem>>, vector<8x1xf32>
        tpu.vector_store %arg12[%c0_63, %c0_64], %102 {strides = array<i32>} : memref<8x1xf32, #tpu.memory_space<vmem>>, vector<8x1xf32>,
        %c0_65 = arith.constant 0 : index
        %c0_66 = arith.constant 0 : index
        %104 = vector.load %arg6[%c0_65, %c0_66] : memref<8x1xf32, #tpu.memory_space<vmem>>, vector<8x1xf32>
        %c0_67 = arith.constant 0 : index
        %c0_68 = arith.constant 0 : index
        %105 = vector.load %arg10[%c0_67, %c0_68] : memref<8x1xf32, #tpu.memory_space<vmem>>, vector<8x1xf32>
        %106 = arith.mulf %105, %102 : vector<8x1xf32>
        %107 = arith.subf %104, %106 : vector<8x1xf32>
        %c0_69 = arith.constant 0 : index
        %c0_70 = arith.constant 0 : index
        %108 = vector.load %arg10[%c0_69, %c0_70] : memref<8x1xf32, #tpu.memory_space<vmem>>, vector<8x1xf32>
        tpu.vector_store %arg10[%c0_69, %c0_70], %107 {strides = array<i32>} : memref<8x1xf32, #tpu.memory_space<vmem>>, vector<8x1xf32>,
      } else {
      }
    } else {
    }
    %c1_i32_4 = arith.constant 1 : i32
    %8 = arith.cmpi eq, %arg0, %c1_i32_4 : i32
    %9 = arith.extui %8 : i1 to i32
    %c0_i32_5 = arith.constant 0 : i32
    %10 = arith.cmpi ne, %9, %c0_i32_5 : i32
    scf.if %10 {
      %c0_6 = arith.constant 0 : index
      %c0_7 = arith.constant 0 : index
      %11 = vector.load %arg12[%c0_6, %c0_7] : memref<8x1xf32, #tpu.memory_space<vmem>>, vector<8x1xf32>
      %c0_8 = arith.constant 0 : index
      %c0_9 = arith.constant 0 : index
      %12 = vector.load %arg10[%c0_8, %c0_9] : memref<8x1xf32, #tpu.memory_space<vmem>>, vector<8x1xf32>
      %c0_10 = arith.constant 0 : index
      %c0_11 = arith.constant 0 : index
      %13 = vector.load %arg7[%c0_10, %c0_11] : memref<8x1xf32, #tpu.memory_space<vmem>>, vector<8x1xf32>
      %c2_i32 = arith.constant 2 : i32
      %14 = arith.muli %1, %c2_i32 : i32
      %c0_i32_12 = arith.constant 0 : i32
      %15 = arith.addi %14, %c0_i32_12 : i32
      %16 = arith.index_cast %15 : i32 to index
      %c0_13 = arith.constant 0 : index
      %c0_14 = arith.constant 0 : index
      %17 = vector.load %arg14[%16, %c0_13, %c0_14] : memref<2x8x256xf32, #tpu.memory_space<vmem>>, vector<1x8x256xf32>
      %18 = vector.shape_cast %17 : vector<1x8x256xf32> to vector<8x256xf32>
      %19 = vector.broadcast %11 : vector<8x1xf32> to vector<8x256xf32>
      %20 = arith.mulf %18, %19 : vector<8x256xf32>
      %21 = vector.broadcast %12 : vector<8x1xf32> to vector<8x256xf32>
      %22 = arith.addf %20, %21 : vector<8x256xf32>
      %c0_15 = arith.constant 0 : index
      %c0_16 = arith.constant 0 : index
      %c0_17 = arith.constant 0 : index
      %23 = vector.load %arg8[%c0_15, %c0_16, %c0_17] : memref<2x8x256xf32, #tpu.memory_space<vmem>>, vector<1x8x256xf32>
      %24 = vector.shape_cast %23 : vector<1x8x256xf32> to vector<8x256xf32>
      %25 = vector.broadcast %13 : vector<8x1xf32> to vector<8x256xf32>
      %26 = arith.maximumf %24, %25 : vector<8x256xf32>
      %27 = arith.subf %22, %26 : vector<8x256xf32>
      %cst = arith.constant 0.000000e+00 : f32
      %28 = vector.broadcast %cst : f32 to vector<8x256xf32>
      %29 = arith.cmpf ogt, %26, %28 : vector<8x256xf32>
      %cst_18 = arith.constant 0.000000e+00 : f32
      %30 = vector.broadcast %cst_18 : f32 to vector<8x256xf32>
      %31 = arith.maximumf %27, %30 : vector<8x256xf32>
      %32 = arith.select %29, %27, %31 : vector<8x256xi1>, vector<8x256xf32>
      %33 = arith.mulf %32, %32 : vector<8x256xf32>
      %34 = vector.extract_strided_slice %33 {offsets = [0, 0], sizes = [8, 128], strides = [1, 1]} : vector<8x256xf32> to vector<8x128xf32>
      %35 = vector.extract_strided_slice %33 {offsets = [0, 128], sizes = [8, 128], strides = [1, 1]} : vector<8x256xf32> to vector<8x128xf32>
      %36 = arith.addf %34, %35 : vector<8x128xf32>
      %c2_i32_19 = arith.constant 2 : i32
      %37 = arith.muli %1, %c2_i32_19 : i32
      %c1_i32_20 = arith.constant 1 : i32
      %38 = arith.addi %37, %c1_i32_20 : i32
      %39 = arith.index_cast %38 : i32 to index
      %c0_21 = arith.constant 0 : index
      %c0_22 = arith.constant 0 : index
      %40 = vector.load %arg14[%39, %c0_21, %c0_22] : memref<2x8x256xf32, #tpu.memory_space<vmem>>, vector<1x8x256xf32>
      %41 = vector.shape_cast %40 : vector<1x8x256xf32> to vector<8x256xf32>
      %42 = vector.broadcast %11 : vector<8x1xf32> to vector<8x256xf32>
      %43 = arith.mulf %41, %42 : vector<8x256xf32>
      %44 = vector.broadcast %12 : vector<8x1xf32> to vector<8x256xf32>
      %45 = arith.addf %43, %44 : vector<8x256xf32>
      %c1 = arith.constant 1 : index
      %c0_23 = arith.constant 0 : index
      %c0_24 = arith.constant 0 : index
      %46 = vector.load %arg8[%c1, %c0_23, %c0_24] : memref<2x8x256xf32, #tpu.memory_space<vmem>>, vector<1x8x256xf32>
      %47 = vector.shape_cast %46 : vector<1x8x256xf32> to vector<8x256xf32>
      %48 = vector.broadcast %13 : vector<8x1xf32> to vector<8x256xf32>
      %49 = arith.maximumf %47, %48 : vector<8x256xf32>
      %50 = arith.subf %45, %49 : vector<8x256xf32>
      %cst_25 = arith.constant 0.000000e+00 : f32
      %51 = vector.broadcast %cst_25 : f32 to vector<8x256xf32>
      %52 = arith.cmpf ogt, %49, %51 : vector<8x256xf32>
      %cst_26 = arith.constant 0.000000e+00 : f32
      %53 = vector.broadcast %cst_26 : f32 to vector<8x256xf32>
      %54 = arith.maximumf %50, %53 : vector<8x256xf32>
      %55 = arith.select %52, %50, %54 : vector<8x256xi1>, vector<8x256xf32>
      %56 = arith.mulf %55, %55 : vector<8x256xf32>
      %57 = vector.extract_strided_slice %56 {offsets = [0, 0], sizes = [8, 128], strides = [1, 1]} : vector<8x256xf32> to vector<8x128xf32>
      %58 = vector.extract_strided_slice %56 {offsets = [0, 128], sizes = [8, 128], strides = [1, 1]} : vector<8x256xf32> to vector<8x128xf32>
      %59 = arith.addf %57, %58 : vector<8x128xf32>
      %60 = arith.addf %36, %59 : vector<8x128xf32>
      %c0_27 = arith.constant 0 : index
      %c0_28 = arith.constant 0 : index
      %61 = vector.load %arg13[%c0_27, %c0_28] : memref<8x128xf32, #tpu.memory_space<vmem>>, vector<8x128xf32>
      %62 = arith.addf %61, %60 : vector<8x128xf32>
      %c0_29 = arith.constant 0 : index
      %c0_30 = arith.constant 0 : index
      %63 = vector.load %arg13[%c0_29, %c0_30] : memref<8x128xf32, #tpu.memory_space<vmem>>, vector<8x128xf32>
      tpu.vector_store %arg13[%c0_29, %c0_30], %62 {strides = array<i32>} : memref<8x128xf32, #tpu.memory_space<vmem>>, vector<8x128xf32>,
      %64 = arith.extui %3 : i1 to i32
      %c0_i32_31 = arith.constant 0 : i32
      %65 = arith.cmpi ne, %64, %c0_i32_31 : i32
      scf.if %65 {
        %c0_32 = arith.constant 0 : index
        %c0_33 = arith.constant 0 : index
        %66 = vector.load %arg13[%c0_32, %c0_33] : memref<8x128xf32, #tpu.memory_space<vmem>>, vector<8x128xf32>
        %67 = vector.shape_cast %66 : vector<8x128xf32> to vector<1x8x128xf32>
        %cst_34 = arith.constant dense<0.000000e+00> : vector<1xf32>
        %68 = vector.multi_reduction <add>, %67, %cst_34 [1, 2] : vector<1x8x128xf32> to vector<1xf32>
        %69 = vector.shape_cast %68 : vector<1xf32> to vector<1x1x1xf32>
        %70 = vector.extract %69[0, 0, 0] : f32 from vector<1x1x1xf32>
        %71 = vector.broadcast %70 : f32 to vector<1x1xf32>
        %c0_35 = arith.constant 0 : index
        %c0_36 = arith.constant 0 : index
        %72 = vector.load %arg9[%c0_35, %c0_36] : memref<1x1xf32, #tpu.memory_space<vmem>>, vector<1x1xf32>
        tpu.vector_store %arg9[%c0_35, %c0_36], %71 {strides = array<i32>} : memref<1x1xf32, #tpu.memory_space<vmem>>, vector<1x1xf32>,
      } else {
      }
    } else {
    }
    return
  }
  func.func @transform_0(%arg0: i32, %arg1: i32, %arg2: i32) -> (i32, i32, i32) {
    %c1_i32 = arith.constant 1 : i32
    %0 = arith.subi %c1_i32, %arg0 : i32
    %1 = arith.muli %0, %arg1 : i32
    %c1_i32_0 = arith.constant 1 : i32
    %2 = arith.subi %c1_i32_0, %arg0 : i32
    %3 = arith.muli %2, %arg2 : i32
    %c0_i32 = arith.constant 0 : i32
    %c0_i32_1 = arith.constant 0 : i32
    return %1, %c0_i32, %3 : i32, i32, i32
  }
  func.func @transform_1(%arg0: i32, %arg1: i32, %arg2: i32) -> (i32, i32) {
    %c0_i32 = arith.constant 0 : i32
    %c0_i32_0 = arith.constant 0 : i32
    %c0_i32_1 = arith.constant 0 : i32
    return %c0_i32, %c0_i32_0 : i32, i32
  }
  func.func @transform_2(%arg0: i32, %arg1: i32, %arg2: i32) -> (i32, i32) {
    %c0_i32 = arith.constant 0 : i32
    %c0_i32_0 = arith.constant 0 : i32
    %c0_i32_1 = arith.constant 0 : i32
    return %c0_i32, %c0_i32_0 : i32, i32
  }
  func.func @transform_3(%arg0: i32, %arg1: i32, %arg2: i32) -> (i32, i32) {
    %c0_i32 = arith.constant 0 : i32
    %c0_i32_0 = arith.constant 0 : i32
    %c0_i32_1 = arith.constant 0 : i32
    return %c0_i32, %c0_i32_0 : i32, i32
  }
  func.func @transform_4(%arg0: i32, %arg1: i32, %arg2: i32) -> (i32, i32) {
    %c0_i32 = arith.constant 0 : i32
    %c0_i32_0 = arith.constant 0 : i32
    %c0_i32_1 = arith.constant 0 : i32
    return %c0_i32, %c0_i32_0 : i32, i32
  }
  func.func @transform_5(%arg0: i32, %arg1: i32, %arg2: i32) -> (i32, i32, i32) {
    %0 = arith.muli %arg0, %arg1 : i32
    %1 = arith.muli %arg0, %arg2 : i32
    %c0_i32 = arith.constant 0 : i32
    %c0_i32_0 = arith.constant 0 : i32
    return %0, %c0_i32, %1 : i32, i32, i32
  }
  func.func @transform_6(%arg0: i32, %arg1: i32, %arg2: i32) -> (i32, i32) {
    %c0_i32 = arith.constant 0 : i32
    %c0_i32_0 = arith.constant 0 : i32
    %c0_i32_1 = arith.constant 0 : i32
    return %c0_i32, %c0_i32_0 : i32, i32
  }
}

</mosaic_0001>

<llo_original>
// kernel: tpu_custom_call.1
$region0: #{tpu_custom_call.1}
  #allocation0 [shape = 'u32[]', space=smem, size = 0x4, offset = 0x4, fixed_abs, tag = 'smem constant byte address 0x4 - core index']
  #allocation1 [shape = 'u32[144,128]{1,0:T(1,128)}', space=vmem, size = 0x12000, scoped, tag = 'internal scratch']
  #allocation2 [shape = 'f32[8,1]{1,0:T(8,128)}', space=vmem, size = 0x1000, scoped, tag = 'scratch operand']
  #allocation3 [shape = 'f32[8,1]{1,0:T(8,128)}', space=vmem, size = 0x1000, scoped, tag = 'scratch operand']
  #allocation4 [shape = 'f32[8,1]{1,0:T(8,128)}', space=vmem, size = 0x1000, scoped, tag = 'scratch operand']
  #allocation5 [shape = 'f32[8,128]{1,0:T(8,128)}', space=vmem, size = 0x1000, scoped, tag = 'scratch operand']
  #allocation6 [shape = 'f32[2,8,256]{2,1,0:T(8,128)}', space=vmem, size = 0x4000, scoped, tag = 'scratch operand']
  %s0 = inlined_call_operand.vmem [shape: f32[2,4,256], index: 0, kind: input, shape index: {}]
  %s1 = inlined_call_operand.vmem [shape: bf16[8,4], index: 1, kind: input, shape index: {}]
  %s2 = inlined_call_operand.vmem [shape: f32[8,1], index: 2, kind: input, shape index: {}]
  %s3 = inlined_call_operand.vmem [shape: f32[8,1], index: 3, kind: input, shape index: {}]
  %s4 = inlined_call_operand.vmem [shape: f32[8,1], index: 4, kind: input, shape index: {}]
  %s5 = inlined_call_operand.vmem [shape: f32[2,8,256], index: 5, kind: input, shape index: {}]
  %s6 = inlined_call_operand.hbm [shape: f32[1,1], index: 6, kind: output, shape index: {}]
  %s7 = sld [smem:[#allocation0]]
  $region77: #{tpu_custom_call.1} parent=0
    _
  %s9 = ssub.s32 1, %s7
  %s10 = scalar_select 0, %s9, %s7
  $region1: #{tpu_custom_call.1} parent=0
    #allocation7 [shape = 'u8[512]{0}', space=vmem, size = 0x400, scoped, tag = 'output window, operand 0, single buffered']
    #allocation8 [shape = 's32[2]{0}', space=sflag, size = 0x8, scoped, tag = 'scoped memory for tpu_custom_call.1']
    %11 = vsyncpa [#allocation8], 0
    loop: start=0, step=1, limit=4
    $region2: #{tpu_custom_call.1} parent=1 // loop_pre_header
      _
    $region3: #{tpu_custom_call.1} parent=1 // loop_header
      %s13 = sphi 0, %s17
      %p14 = scmp.ge.s32.totalorder %s13, 4
      %s20 = sphi 0, %s39
      %s21 = sphi 0, %s35
      %s22 = sphi 0, %s31
      %s23 = sphi 0, %s20
      %s24 = sphi 0, %s21
      %s25 = sphi 0, %s22
      %s26 = sphi 0, %s23
      %s27 = sphi 0, %s24
      %s28 = sphi 0, %s25
      %s50 = sphi 0, %s52
      %s53 = sphi 0, %s50
      %s54 = sphi 0, %s53
      %s70 = sphi 0, %s54
      %s74 = sphi 0, %s74
      %s76 = sphi 0, %s74
      %s77 = sphi 0, %s76
      %s91 = sphi 0, %s77
      %s95 = sphi 0, %s95
      %s97 = sphi 0, %s95
      %s98 = sphi 0, %s97
      %s112 = sphi 0, %s98
      %s116 = sphi 0, %s116
      %s118 = sphi 0, %s116
      %s119 = sphi 0, %s118
      %s133 = sphi 0, %s119
      %s137 = sphi 0, %s137
      %s139 = sphi 0, %s137
      %s140 = sphi 0, %s139
      %s154 = sphi 0, %s140
      %s166 = sphi 0, %s168
      %s169 = sphi 0, %s166
      %s170 = sphi 0, %s169
      %s186 = sphi 0, %s170
      %s190 = sphi 0, %s190
      %s192 = sphi 0, %s190
      %s193 = sphi 0, %s192
      %s207 = sphi 0, %s193
    $region4: #{tpu_custom_call.1} parent=1 // loop_header_branch
      %16 = sbr.rel (%p14) target = $region8
    $region5: #{tpu_custom_call.1} parent=1 // loop_body
      %s18 = ssub.s32 %s13, 1
      %s19 = ssub.s32 %s13, 2
      %s29 = sadd.s32 1, %s22
      %p30 = scmp.ge.s32.totalorder %s29, 1
      %s31 = scalar_select %p30, 0, %s29
      %s32 = sadd.s32 1, %s21
      %s33 = scalar_select %p30, %s32, %s21
      %p34 = scmp.ge.s32.totalorder %s33, 1
      %s35 = scalar_select %p34, 0, %s33
      %s36 = sadd.s32 1, %s20
      %s37 = scalar_select %p34, %s36, %s20
      %p38 = scmp.ge.s32.totalorder %s37, 2
      %s39 = scalar_select %p38, 0, %s37
      %s40 = ssub.s32 1, %s20
      %s41 = smul.u32 %s40, %s21
      %s42 = smul.u32 %s40, %s22
      %s43 = ssub.s32 1, %s39
      %s44 = smul.u32 %s43, %s35
      %s45 = smul.u32 %s43, %s31
      %s46 = ssub.s32 %s41, %s44
      %s47 = ssub.s32 %s42, %s45
      %s48 = sor.u32 %s46, %s47
      %p49 = scmp.eq.s32.totalorder %s48, 0
      %s51 = sadd.s32 %s50, 1
      %s52 = scalar_select %p49, %s50, %s51
      %p55 = pneg %p49
      %p56 = scmp.eq.s32.totalorder %s13, 1
      %p57 = por %p55, %p56
      %p58 = scmp.ne.s32.totalorder %s50, %s53
      %p59 = scmp.eq.s32.totalorder %s13, 0
      %p60 = por %p58, %p59
      %p61 = scmp.ne.s32.totalorder %s50, %s53
      %p62 = scmp.eq.s32.totalorder %s18, 1
      %p63 = por %p61, %p62
      %p64 = scmp.ne.s32.totalorder %s53, %s54
      %p65 = scmp.eq.s32.totalorder %s18, 0
      %p66 = por %p64, %p65
      %p67 = scmp.ne.s32.totalorder %s53, %s54
      %p68 = scmp.eq.s32.totalorder %s19, 1
      %p69 = por %p67, %p68
      %p71 = scmp.ne.s32.totalorder %s54, %s70
      %p72 = scmp.eq.s32.totalorder %s19, 0
      %p73 = por %p71, %p72
      %s75 = sadd.s32 %s74, 1
      %p78 = scmp.eq.s32.totalorder %s13, 1
      %p79 = scmp.ne.s32.totalorder %s74, %s76
      %p80 = scmp.eq.s32.totalorder %s13, 0
      %p81 = por %p79, %p80
      %p82 = scmp.ne.s32.totalorder %s74, %s76
      %p83 = scmp.eq.s32.totalorder %s18, 1
      %p84 = por %p82, %p83
      %p85 = scmp.ne.s32.totalorder %s76, %s77
      %p86 = scmp.eq.s32.totalorder %s18, 0
      %p87 = por %p85, %p86
      %p88 = scmp.ne.s32.totalorder %s76, %s77
      %p89 = scmp.eq.s32.totalorder %s19, 1
      %p90 = por %p88, %p89
      %p92 = scmp.ne.s32.totalorder %s77, %s91
      %p93 = scmp.eq.s32.totalorder %s19, 0
      %p94 = por %p92, %p93
      %s96 = sadd.s32 %s95, 1
      %p99 = scmp.eq.s32.totalorder %s13, 1
      %p100 = scmp.ne.s32.totalorder %s95, %s97
      %p101 = scmp.eq.s32.totalorder %s13, 0
      %p102 = por %p100, %p101
      %p103 = scmp.ne.s32.totalorder %s95, %s97
      %p104 = scmp.eq.s32.totalorder %s18, 1
      %p105 = por %p103, %p104
      %p106 = scmp.ne.s32.totalorder %s97, %s98
      %p107 = scmp.eq.s32.totalorder %s18, 0
      %p108 = por %p106, %p107
      %p109 = scmp.ne.s32.totalorder %s97, %s98
      %p110 = scmp.eq.s32.totalorder %s19, 1
      %p111 = por %p109, %p110
      %p113 = scmp.ne.s32.totalorder %s98, %s112
      %p114 = scmp.eq.s32.totalorder %s19, 0
      %p115 = por %p113, %p114
      %s117 = sadd.s32 %s116, 1
      %p120 = scmp.eq.s32.totalorder %s13, 1
      %p121 = scmp.ne.s32.totalorder %s116, %s118
      %p122 = scmp.eq.s32.totalorder %s13, 0
      %p123 = por %p121, %p122
      %p124 = scmp.ne.s32.totalorder %s116, %s118
      %p125 = scmp.eq.s32.totalorder %s18, 1
      %p126 = por %p124, %p125
      %p127 = scmp.ne.s32.totalorder %s118, %s119
      %p128 = scmp.eq.s32.totalorder %s18, 0
      %p129 = por %p127, %p128
      %p130 = scmp.ne.s32.totalorder %s118, %s119
      %p131 = scmp.eq.s32.totalorder %s19, 1
      %p132 = por %p130, %p131
      %p134 = scmp.ne.s32.totalorder %s119, %s133
      %p135 = scmp.eq.s32.totalorder %s19, 0
      %p136 = por %p134, %p135
      %s138 = sadd.s32 %s137, 1
      %p141 = scmp.eq.s32.totalorder %s13, 1
      %p142 = scmp.ne.s32.totalorder %s137, %s139
      %p143 = scmp.eq.s32.totalorder %s13, 0
      %p144 = por %p142, %p143
      %p145 = scmp.ne.s32.totalorder %s137, %s139
      %p146 = scmp.eq.s32.totalorder %s18, 1
      %p147 = por %p145, %p146
      %p148 = scmp.ne.s32.totalorder %s139, %s140
      %p149 = scmp.eq.s32.totalorder %s18, 0
      %p150 = por %p148, %p149
      %p151 = scmp.ne.s32.totalorder %s139, %s140
      %p152 = scmp.eq.s32.totalorder %s19, 1
      %p153 = por %p151, %p152
      %p155 = scmp.ne.s32.totalorder %s140, %s154
      %p156 = scmp.eq.s32.totalorder %s19, 0
      %p157 = por %p155, %p156
      %s158 = smul.u32 %s20, %s21
      %s159 = smul.u32 %s20, %s22
      %s160 = smul.u32 %s39, %s35
      %s161 = smul.u32 %s39, %s31
      %s162 = ssub.s32 %s158, %s160
      %s163 = ssub.s32 %s159, %s161
      %s164 = sor.u32 %s162, %s163
      %p165 = scmp.eq.s32.totalorder %s164, 0
      %s167 = sadd.s32 %s166, 1
      %s168 = scalar_select %p165, %s166, %s167
      %p171 = pneg %p165
      %p172 = scmp.eq.s32.totalorder %s13, 1
      %p173 = por %p171, %p172
      %p174 = scmp.ne.s32.totalorder %s166, %s169
      %p175 = scmp.eq.s32.totalorder %s13, 0
      %p176 = por %p174, %p175
      %p177 = scmp.ne.s32.totalorder %s166, %s169
      %p178 = scmp.eq.s32.totalorder %s18, 1
      %p179 = por %p177, %p178
      %p180 = scmp.ne.s32.totalorder %s169, %s170
      %p181 = scmp.eq.s32.totalorder %s18, 0
      %p182 = por %p180, %p181
      %p183 = scmp.ne.s32.totalorder %s169, %s170
      %p184 = scmp.eq.s32.totalorder %s19, 1
      %p185 = por %p183, %p184
      %p187 = scmp.ne.s32.totalorder %s170, %s186
      %p188 = scmp.eq.s32.totalorder %s19, 0
      %p189 = por %p187, %p188
      %s191 = sadd.s32 %s190, 1
      %p194 = scmp.eq.s32.totalorder %s13, 1
      %p195 = scmp.ne.s32.totalorder %s190, %s192
      %p196 = scmp.eq.s32.totalorder %s13, 0
      %p197 = por %p195, %p196
      %p198 = scmp.ne.s32.totalorder %s190, %s192
      %p199 = scmp.eq.s32.totalorder %s18, 1
      %p200 = por %p198, %p199
      %p201 = scmp.ne.s32.totalorder %s192, %s193
      %p202 = scmp.eq.s32.totalorder %s18, 0
      %p203 = por %p201, %p202
      %p204 = scmp.ne.s32.totalorder %s192, %s193
      %p205 = scmp.eq.s32.totalorder %s19, 1
      %p206 = por %p204, %p205
      %p208 = scmp.ne.s32.totalorder %s193, %s207
      %p209 = scmp.eq.s32.totalorder %s19, 0
      %p210 = por %p208, %p209
      %p211 = scmp.le.s32.totalorder 1, %s13
      %p212 = scmp.lt.s32.totalorder %s13, 3
      %p213 = pnand %p211, %p212
      %p214 = pneg %p213
      // Predicated region
      $region9: #{tpu_custom_call.1} parent=5 // pred_check
        _
      $region10: #{tpu_custom_call.1} parent=5 // pred_check_branch
        %216 = sbr.rel (%p213) target = $region12
      $region11: #{tpu_custom_call.1} parent=5 // pred_region
        %s217 = ssub.s32 %s13, 1
        // Predicated region
        $region13: #{tpu_custom_call.1} parent=11 // pred_check
          %p218 = pneg %p87
        $region14: #{tpu_custom_call.1} parent=11 // pred_check_branch
          %220 = sbr.rel (%p218) target = $region16
        $region15: #{tpu_custom_call.1} parent=11 // pred_region
          _
        $region16: #{tpu_custom_call.1} parent=11 // pred_fallthru
          _
        // Predicated region
        $region17: #{tpu_custom_call.1} parent=11 // pred_check
          %p221 = pneg %p108
        $region18: #{tpu_custom_call.1} parent=11 // pred_check_branch
          %223 = sbr.rel (%p221) target = $region20
        $region19: #{tpu_custom_call.1} parent=11 // pred_region
          _
        $region20: #{tpu_custom_call.1} parent=11 // pred_fallthru
          _
        // Predicated region
        $region21: #{tpu_custom_call.1} parent=11 // pred_check
          %p224 = pneg %p129
        $region22: #{tpu_custom_call.1} parent=11 // pred_check_branch
          %226 = sbr.rel (%p224) target = $region24
        $region23: #{tpu_custom_call.1} parent=11 // pred_region
          _
        $region24: #{tpu_custom_call.1} parent=11 // pred_fallthru
          _
        // Predicated region
        $region25: #{tpu_custom_call.1} parent=11 // pred_check
          %p227 = pneg %p150
        $region26: #{tpu_custom_call.1} parent=11 // pred_check_branch
          %229 = sbr.rel (%p227) target = $region28
        $region27: #{tpu_custom_call.1} parent=11 // pred_region
          _
        $region28: #{tpu_custom_call.1} parent=11 // pred_fallthru
          _
      $region12: #{tpu_custom_call.1} parent=5 // pred_fallthru
        _
      %p230 = scmp.lt.s32.totalorder %s13, 2
      // Predicated region
      $region29: #{tpu_custom_call.1} parent=5 // pred_check
        %p231 = pneg %p230
      $region30: #{tpu_custom_call.1} parent=5 // pred_check_branch
        %233 = sbr.rel (%p231) target = $region32
      $region31: #{tpu_custom_call.1} parent=5 // pred_region
        // Predicated region
        $region33: #{tpu_custom_call.1} parent=31 // pred_check
          %p234 = pneg %p60
        $region34: #{tpu_custom_call.1} parent=31 // pred_check_branch
          %236 = sbr.rel (%p234) target = $region36
        $region35: #{tpu_custom_call.1} parent=31 // pred_region
          %s237 = ssub.s32 1, %s20
          %s238 = smul.u32 %s237, %s21
          %s239 = smul.u32 %s237, %s22
          %s240 = smul.u32 2, %s238
          %s241 = smul.u32 2, %s239
          %p242 = scmp.lt.s32.totalorder %s240, 1
          %s243 = scalar_select %p242, %s240, 1
          %p244 = scmp.lt.s32.totalorder %s241, 1
          %s245 = scalar_select %p244, %s241, 1
          %s246 = smul.addr %s243, 2
          %s247 = sadd.s32 %s245, %s246
          %s248 = smul.addr %s247, 4
          %s249 = scalar_lea.vmem %s0, %s248
          %s250 = ssub.s32 1, %s20
          %s251 = smul.u32 %s250, %s21
          %s252 = smul.u32 %s250, %s22
          %s253 = smul.u32 2, %s251
          %s254 = smul.u32 2, %s252
        $region36: #{tpu_custom_call.1} parent=31 // pred_fallthru
          _
        // Predicated region
        $region37: #{tpu_custom_call.1} parent=31 // pred_check
          %p255 = pneg %p176
        $region38: #{tpu_custom_call.1} parent=31 // pred_check_branch
          %257 = sbr.rel (%p255) target = $region40
        $region39: #{tpu_custom_call.1} parent=31 // pred_region
          %s258 = smul.u32 %s20, %s21
          %s259 = smul.u32 %s20, %s22
          %s260 = smul.u32 2, %s258
          %s261 = smul.u32 2, %s259
          %p262 = scmp.lt.s32.totalorder %s260, 1
          %s263 = scalar_select %p262, %s260, 1
          %p264 = scmp.lt.s32.totalorder %s261, 1
          %s265 = scalar_select %p264, %s261, 1
          %s266 = smul.addr %s263, 2
          %s267 = sadd.s32 %s265, %s266
          %s268 = smul.addr %s267, 8
          %s269 = scalar_lea.vmem %s5, %s268
          %s270 = smul.u32 %s20, %s21
          %s271 = smul.u32 %s20, %s22
          %s272 = smul.u32 2, %s270
          %s273 = smul.u32 2, %s271
        $region40: #{tpu_custom_call.1} parent=31 // pred_fallthru
          _
      $region32: #{tpu_custom_call.1} parent=5 // pred_fallthru
        _
      %p274 = scmp.le.s32.totalorder 1, %s13
      %p275 = scmp.lt.s32.totalorder %s13, 3
      %p276 = pnand %p274, %p275
      %p277 = pneg %p276
      // Predicated region
      $region41: #{tpu_custom_call.1} parent=5 // pred_check
        _
      $region42: #{tpu_custom_call.1} parent=5 // pred_check_branch
        %279 = sbr.rel (%p276) target = $region44
      $region43: #{tpu_custom_call.1} parent=5 // pred_region
        %s280 = ssub.s32 %s13, 1
        %s281 = ssub.s32 1, %s23
        %s282 = smul.u32 %s281, %s24
        %s283 = smul.u32 %s281, %s25
        %s284 = smul.u32 2, %s282
        %s285 = smul.u32 2, %s283
        %p286 = scmp.lt.s32.totalorder %s284, 1
        %s287 = scalar_select %p286, %s284, 1
        %p288 = scmp.lt.s32.totalorder %s285, 1
        %s289 = scalar_select %p288, %s285, 1
        %s290 = smul.addr %s287, 2
        %s291 = sadd.s32 %s289, %s290
        %s292 = smul.addr %s291, 4
        %s293 = scalar_lea.vmem %s0, %s292
        %p294 = pneg %p66
        %p295 = pneg %p63
        %p296 = pneg %p87
        %p297 = pneg %p84
        %p298 = pneg %p108
        %p299 = pneg %p105
        %p300 = pneg %p129
        %p301 = pneg %p126
        %p302 = pneg %p150
        %p303 = pneg %p147
        %s304 = smul.u32 %s23, %s24
        %s305 = smul.u32 %s23, %s25
        %s306 = smul.u32 2, %s304
        %s307 = smul.u32 2, %s305
        %p308 = scmp.lt.s32.totalorder %s306, 1
        %s309 = scalar_select %p308, %s306, 1
        %p310 = scmp.lt.s32.totalorder %s307, 1
        %s311 = scalar_select %p310, %s307, 1
        %s312 = smul.addr %s309, 2
        %s313 = sadd.s32 %s311, %s312
        %s314 = smul.addr %s313, 8
        %s315 = scalar_lea.vmem %s5, %s314
        %p316 = pneg %p182
        %p317 = pneg %p179
        %p318 = pneg %p203
        %p319 = pneg %p200
        %s320 = ssub.s32 1, %s23
        %s321 = smul.u32 %s320, %s24
        %s322 = smul.u32 %s320, %s25
        %s323 = smul.u32 2, %s321
        %s324 = smul.u32 2, %s322
        %p325 = scmp.lt.s32.totalorder %s323, 1
        %s326 = scalar_select %p325, %s323, 1
        %p327 = scmp.lt.s32.totalorder %s324, 1
        %s328 = scalar_select %p327, %s324, 1
        %s329 = smul.addr %s326, 2
        %s330 = sadd.s32 %s328, %s329
        %s331 = smul.addr %s330, 4
        %s332 = scalar_lea.vmem %s0, %s331
        %s333 = ssub.s32 1, %s23
        %s334 = smul.u32 %s333, %s24
        %s335 = smul.u32 %s333, %s25
        %s336 = smul.u32 2, %s334
        %s337 = smul.u32 2, %s335
        %s338 = smul.u32 %s23, %s24
        %s339 = smul.u32 %s23, %s25
        %s340 = smul.u32 2, %s338
        %s341 = smul.u32 2, %s339
        %p342 = scmp.lt.s32.totalorder %s340, 1
        %s343 = scalar_select %p342, %s340, 1
        %p344 = scmp.lt.s32.totalorder %s341, 1
        %s345 = scalar_select %p344, %s341, 1
        %s346 = smul.addr %s343, 2
        %s347 = sadd.s32 %s345, %s346
        %s348 = smul.addr %s347, 8
        %s349 = scalar_lea.vmem %s5, %s348
        %s350 = smul.u32 %s23, %s24
        %s351 = smul.u32 %s23, %s25
        %s352 = smul.u32 2, %s350
        %s353 = smul.u32 2, %s351
        %s355 = sadd.s32 %s24, %s25
        %p356 = scmp.eq.s32.totalorder %s355, 0
        %v357 = vld [vmem:[%s1] sm:$0xf]
        %p358 = scmp.eq.s32.totalorder %s23, 0
        // Predicated region
        $region45: #{tpu_custom_call.1} parent=43 // pred_check
          %p359 = pneg %p358
        $region46: #{tpu_custom_call.1} parent=43 // pred_check_branch
          %361 = sbr.rel (%p359) target = $region48
        $region47: #{tpu_custom_call.1} parent=43 // pred_region
          // Predicated region
          $region49: #{tpu_custom_call.1} parent=47 // pred_check
            %p362 = pneg %p356
          $region50: #{tpu_custom_call.1} parent=47 // pred_check_branch
            %364 = sbr.rel (%p362) target = $region52
          $region51: #{tpu_custom_call.1} parent=47 // pred_region
            %vm365 = vcmask 7168
            %366 = vst.msk [vmem:[#allocation2] sm:$0xff] %vm365, 0.0
            %367 = vst.msk [vmem:[#allocation3] sm:$0xff] %vm365, 0.0
            %368 = vst [vmem:[#allocation5] sm:$0xff] 0.0
          $region52: #{tpu_custom_call.1} parent=47 // pred_fallthru
            _
          %v369 = vld [vmem:[%s332] sm:$0xff]
          %v371 = vcombine.high %v369, %v369
          %v373 = vpack.c.bf16 %v369, %v369
          %v374 = vpack.c.bf16 %v371, %v371
          %vm375 = vcmask 31744
          %v377 = vsel %vm375, %v357, 0
          %vm379 = vcmask 1041408
          %v381 = vsel %vm379, %v373, 0
          %v384 = vsel %vm379, %v374, 0
          %386 = vmatprep.subr.bf16.mxu0 %v384
          %387 = vmatpush1.bf16.msra.mxu0 %v381
          %388 = vmatprep.subr.bf16.mxu0 0
          %389 = vmatpush1.bf16.msra.mxu0 0
          %390 = vmatprep.subr.bf16.mxu0 0
          %391 = vmatpush1.bf16.msra.mxu0 0
          %392 = vmatprep.subr.bf16.mxu0 0
          %393 = vmatpush1.bf16.msra.mxu0 0
          %394 = vmatprep.subr.bf16.mxu0 0
          %395 = vmatpush1.bf16.msra.mxu0 0
          %396 = vmatprep.subr.bf16.mxu0 0
          %397 = vmatpush1.bf16.msra.mxu0 0
          %398 = vmatprep.subr.bf16.mxu0 0
          %399 = vmatpush1.bf16.msra.mxu0 0
          %400 = vmatprep.subr.bf16.mxu0 0
          %401 = vmatpush1.bf16.msra.mxu0 0
          %402 = vmatprep.subr.bf16.mxu0 0
          %403 = vmatpush1.bf16.msra.mxu0 0
          %404 = vmatprep.subr.bf16.mxu0 0
          %405 = vmatpush1.bf16.msra.mxu0 0
          %406 = vmatprep.subr.bf16.mxu0 0
          %407 = vmatpush1.bf16.msra.mxu0 0
          %408 = vmatprep.subr.bf16.mxu0 0
          %409 = vmatpush1.bf16.msra.mxu0 0
          %410 = vmatprep.subr.bf16.mxu0 0
          %411 = vmatpush1.bf16.msra.mxu0 0
          %412 = vmatprep.subr.bf16.mxu0 0
          %413 = vmatpush1.bf16.msra.mxu0 0
          %414 = vmatprep.subr.bf16.mxu0 0
          %415 = vmatpush1.bf16.msra.mxu0 0
          %416 = vmatprep.subr.bf16.mxu0 0
          %417 = vmatpush1.bf16.msra.mxu0 0
          %418 = vmatprep.mubr.bf16.mxu0 0
          %419 = vmatmul.mubr.bf16.gmra.mrb[0].mxu0 %v377
          %v420 = vpop.f32.mrb[0].mxu0
          %v421 = vadd.f32 0.0, %v420
          %v422 = vpop.f32.mrb[0].mxu0
          %v423 = vadd.f32 0.0, %v422
          %v424 = vpop.f32.mrb[0].mxu0
          %v425 = vpop.f32.mrb[0].mxu0
          %426 = vdwg.mxu0
          %s427 = smul.u32 %s355, 2
          %s428 = smul.u32 %s427, 2
          %s429 = smul.addr %s428, 8
          %s430 = scalar_lea.vmem [#allocation6], %s429
          %431 = vst [vmem:[%s430] sm:$0xff] %v421
          %432 = vst [vmem:[%s430 + $0x8] sm:$0xff] %v423
          %v433 = vadd.f32 %v421, %v423
          %434 = vadd.xlane.f32.xlu0 %v433
          %v435 = vpop.xlane.xlu0 %434
          %v436 = vmul.f32 %v435, 0.00390625
          %v437 = vsub.f32 %v421, %v436
          %v438 = vsub.f32 %v423, %v436
          %v439 = vmul.f32 %v437, %v437
          %v440 = vmul.f32 %v438, %v438
          %v441 = vadd.f32 %v439, %v440
          %442 = vadd.xlane.f32.xlu0 %v441
          %v443 = vpop.xlane.xlu0 %442
          %s444 = scvt.s32.f32 %s427
          %v445 = vld [vmem:[#allocation2] sm:$0xff]
          %v446 = vsub.f32 %v436, %v445
          %s447 = sadd.f32 %s444, 1.0
          %v448 = vstv %s447
          %v449 = vrcp.pop %v448
          %v450 = vmul.f32 %v446, %v449
          %v451 = vadd.f32 %v445, %v450
          %vm452 = vcmask 7168
          %453 = vst.msk [vmem:[#allocation2] sm:$0xff] %vm452, %v451
          %v454 = vld [vmem:[#allocation3] sm:$0xff]
          %v455 = vadd.f32 %v454, %v443
          %v456 = vmul.f32 %v446, %v446
          %s457 = smul.f32 %s444, 256.0
          %v458 = vstv %s447
          %v459 = vrcp.pop %v458
          %s460 = vtos %v459
          %s461 = smul.f32 %s457, %s460
          %v462 = vstv %s461
          %v463 = vmul.f32 %v456, %v462
          %v464 = vadd.f32 %v455, %v463
          %465 = vst.msk [vmem:[#allocation3] sm:$0xff] %vm452, %v464
          %s466 = scalar_lea.vmem %s332, 8
          %v467 = vld [vmem:[%s466] sm:$0xff]
          %v469 = vcombine.high %v467, %v467
          %v471 = vpack.c.bf16 %v467, %v467
          %v472 = vpack.c.bf16 %v469, %v469
          %v474 = vsel %vm379, %v471, 0
          %v477 = vsel %vm379, %v472, 0
          %479 = vmatprep.subr.bf16.mxu0 %v477
          %480 = vmatpush1.bf16.msra.mxu0 %v474
          %481 = vmatprep.subr.bf16.mxu0 0
          %482 = vmatpush1.bf16.msra.mxu0 0
          %483 = vmatprep.subr.bf16.mxu0 0
          %484 = vmatpush1.bf16.msra.mxu0 0
          %485 = vmatprep.subr.bf16.mxu0 0
          %486 = vmatpush1.bf16.msra.mxu0 0
          %487 = vmatprep.subr.bf16.mxu0 0
          %488 = vmatpush1.bf16.msra.mxu0 0
          %489 = vmatprep.subr.bf16.mxu0 0
          %490 = vmatpush1.bf16.msra.mxu0 0
          %491 = vmatprep.subr.bf16.mxu0 0
          %492 = vmatpush1.bf16.msra.mxu0 0
          %493 = vmatprep.subr.bf16.mxu0 0
          %494 = vmatpush1.bf16.msra.mxu0 0
          %495 = vmatprep.subr.bf16.mxu0 0
          %496 = vmatpush1.bf16.msra.mxu0 0
          %497 = vmatprep.subr.bf16.mxu0 0
          %498 = vmatpush1.bf16.msra.mxu0 0
          %499 = vmatprep.subr.bf16.mxu0 0
          %500 = vmatpush1.bf16.msra.mxu0 0
          %501 = vmatprep.subr.bf16.mxu0 0
          %502 = vmatpush1.bf16.msra.mxu0 0
          %503 = vmatprep.subr.bf16.mxu0 0
          %504 = vmatpush1.bf16.msra.mxu0 0
          %505 = vmatprep.subr.bf16.mxu0 0
          %506 = vmatpush1.bf16.msra.mxu0 0
          %507 = vmatprep.subr.bf16.mxu0 0
          %508 = vmatpush1.bf16.msra.mxu0 0
          %509 = vmatprep.subr.bf16.mxu0 0
          %510 = vmatpush1.bf16.msra.mxu0 0
          %511 = vmatprep.mubr.bf16.mxu0 0
          %512 = vmatmul.mubr.bf16.gmra.mrb[0].mxu0 %v377
          %v513 = vpop.f32.mrb[0].mxu0
          %v514 = vadd.f32 0.0, %v513
          %v515 = vpop.f32.mrb[0].mxu0
          %v516 = vadd.f32 0.0, %v515
          %v517 = vpop.f32.mrb[0].mxu0
          %v518 = vpop.f32.mrb[0].mxu0
          %519 = vdwg.mxu0
          %s520 = sadd.s32 %s427, 1
          %s521 = smul.u32 %s520, 2
          %s522 = smul.addr %s521, 8
          %s523 = scalar_lea.vmem [#allocation6], %s522
          %524 = vst [vmem:[%s523] sm:$0xff] %v514
          %525 = vst [vmem:[%s523 + $0x8] sm:$0xff] %v516
          %v526 = vadd.f32 %v514, %v516
          %527 = vadd.xlane.f32.xlu0 %v526
          %v528 = vpop.xlane.xlu0 %527
          %v529 = vmul.f32 %v528, 0.00390625
          %v530 = vsub.f32 %v514, %v529
          %v531 = vsub.f32 %v516, %v529
          %v532 = vmul.f32 %v530, %v530
          %v533 = vmul.f32 %v531, %v531
          %v534 = vadd.f32 %v532, %v533
          %535 = vadd.xlane.f32.xlu0 %v534
          %v536 = vpop.xlane.xlu0 %535
          %s537 = scvt.s32.f32 %s520
          %v538 = vld [vmem:[#allocation2] sm:$0xff]
          %v539 = vsub.f32 %v529, %v538
          %s540 = sadd.f32 %s537, 1.0
          %v541 = vstv %s540
          %v542 = vrcp.pop %v541
          %v543 = vmul.f32 %v539, %v542
          %v544 = vadd.f32 %v538, %v543
          %545 = vst.msk [vmem:[#allocation2] sm:$0xff] %vm452, %v544
          %v546 = vld [vmem:[#allocation3] sm:$0xff]
          %v547 = vadd.f32 %v546, %v536
          %v548 = vmul.f32 %v539, %v539
          %s549 = smul.f32 %s537, 256.0
          %v550 = vstv %s540
          %v551 = vrcp.pop %v550
          %s552 = vtos %v551
          %s553 = smul.f32 %s549, %s552
          %v554 = vstv %s553
          %v555 = vmul.f32 %v548, %v554
          %v556 = vadd.f32 %v547, %v555
          %557 = vst.msk [vmem:[#allocation3] sm:$0xff] %vm452, %v556
          // Predicated region
          $region53: #{tpu_custom_call.1} parent=47 // pred_check
            %p558 = pneg %p356
          $region54: #{tpu_custom_call.1} parent=47 // pred_check_branch
            %560 = sbr.rel (%p558) target = $region56
          $region55: #{tpu_custom_call.1} parent=47 // pred_region
            %v561 = vld [vmem:[#allocation3] sm:$0xff]
            %v562 = vmul.f32 %v561, 0.001953125
            %v563 = vadd.f32 %v562, 1e-05
            %v564 = vrsqrt.pop %v563
            %v565 = vld [vmem:[%s2] sm:$0xff]
            %v566 = vmul.f32 %v564, %v565
            %567 = vst.msk [vmem:[#allocation4] sm:$0xff] %vm452, %v566
            %v568 = vld [vmem:[%s3] sm:$0xff]
            %v569 = vld [vmem:[#allocation2] sm:$0xff]
            %v570 = vmul.f32 %v569, %v566
            %v571 = vsub.f32 %v568, %v570
            %572 = vst.msk [vmem:[#allocation2] sm:$0xff] %vm452, %v571
          $region56: #{tpu_custom_call.1} parent=47 // pred_fallthru
            _
        $region48: #{tpu_custom_call.1} parent=43 // pred_fallthru
          _
        %p573 = scmp.eq.s32.totalorder %s23, 1
        // Predicated region
        $region57: #{tpu_custom_call.1} parent=43 // pred_check
          %p574 = pneg %p573
        $region58: #{tpu_custom_call.1} parent=43 // pred_check_branch
          %576 = sbr.rel (%p574) target = $region60
        $region59: #{tpu_custom_call.1} parent=43 // pred_region
          %v577 = vld [vmem:[#allocation4] sm:$0xff]
          %v578 = vld [vmem:[#allocation2] sm:$0xff]
          %v579 = vld [vmem:[%s4] sm:$0xff]
          %s580 = smul.u32 %s355, 2
          %s581 = smul.u32 %s580, 2
          %s582 = smul.addr %s581, 8
          %s583 = scalar_lea.vmem [#allocation6], %s582
          %v584 = vld [vmem:[%s583] sm:$0xff]
          %v585 = vld [vmem:[%s583 + $0x8] sm:$0xff]
          %587 = vset.pattern.permute.xlu0 0
          %588 = vperm.xlu0 %587, %v577
          %v589 = vpop.permute.xlu0 %588
          %v591 = vmul.f32 %v584, %v589
          %v592 = vmul.f32 %v585, %v589
          %594 = vset.pattern.permute.xlu0 0
          %595 = vperm.xlu0 %594, %v578
          %v596 = vpop.permute.xlu0 %595
          %v598 = vadd.f32 %v591, %v596
          %v599 = vadd.f32 %v592, %v596
          %v600 = vld [vmem:[%s349] sm:$0xff]
          %v601 = vld [vmem:[%s349 + $0x8] sm:$0xff]
          %603 = vset.pattern.permute.xlu0 0
          %604 = vperm.xlu0 %603, %v579
          %v605 = vpop.permute.xlu0 %604
          %v607 = vmax.f32 %v600, %v605
          %v608 = vmax.f32 %v601, %v605
          %v609 = vsub.f32 %v598, %v607
          %v610 = vsub.f32 %v599, %v608
          %vm611 = vcmp.gt.f32.partialorder %v607, 0.0
          %vm612 = vcmp.gt.f32.partialorder %v608, 0.0
          %v613 = vmax.f32 %v609, 0.0
          %v614 = vmax.f32 %v610, 0.0
          %v615 = vsel %vm611, %v609, %v613
          %v616 = vsel %vm612, %v610, %v614
          %v617 = vmul.f32 %v615, %v615
          %v618 = vmul.f32 %v616, %v616
          %v619 = vadd.f32 %v617, %v618
          %s620 = sadd.s32 %s580, 1
          %s621 = smul.u32 %s620, 2
          %s622 = smul.addr %s621, 8
          %s623 = scalar_lea.vmem [#allocation6], %s622
          %v624 = vld [vmem:[%s623] sm:$0xff]
          %v625 = vld [vmem:[%s623 + $0x8] sm:$0xff]
          %v626 = vmul.f32 %v624, %v589
          %v627 = vmul.f32 %v625, %v589
          %v628 = vadd.f32 %v626, %v596
          %v629 = vadd.f32 %v627, %v596
          %s630 = scalar_lea.vmem %s349, 16
          %v631 = vld [vmem:[%s630] sm:$0xff]
          %v632 = vld [vmem:[%s630 + $0x8] sm:$0xff]
          %v633 = vmax.f32 %v631, %v605
          %v634 = vmax.f32 %v632, %v605
          %v635 = vsub.f32 %v628, %v633
          %v636 = vsub.f32 %v629, %v634
          %vm637 = vcmp.gt.f32.partialorder %v633, 0.0
          %vm638 = vcmp.gt.f32.partialorder %v634, 0.0
          %v639 = vmax.f32 %v635, 0.0
          %v640 = vmax.f32 %v636, 0.0
          %v641 = vsel %vm637, %v635, %v639
          %v642 = vsel %vm638, %v636, %v640
          %v643 = vmul.f32 %v641, %v641
          %v644 = vmul.f32 %v642, %v642
          %v645 = vadd.f32 %v643, %v644
          %v646 = vadd.f32 %v619, %v645
          %v647 = vld [vmem:[#allocation5] sm:$0xff]
          %v648 = vadd.f32 %v647, %v646
          %649 = vst [vmem:[#allocation5] sm:$0xff] %v648
          // Predicated region
          $region61: #{tpu_custom_call.1} parent=59 // pred_check
            %p650 = pneg %p356
          $region62: #{tpu_custom_call.1} parent=59 // pred_check_branch
            %652 = sbr.rel (%p650) target = $region64
          $region63: #{tpu_custom_call.1} parent=59 // pred_region
            %v653 = vld [vmem:[#allocation5] sm:$0xff]
            %654 = vadd.xlane.f32.xlu0 %v653
            %v655 = vpop.xlane.xlu0 %654
            %v656 = vrot.slane %v655, 4
            %v657 = vadd.f32 %v655, %v656
            %v658 = vrot.slane %v657, 2
            %v659 = vadd.f32 %v657, %v658
            %v660 = vrot.slane %v659, 1
            %v661 = vadd.f32 %v659, %v660
            %s662 = vtos %v661
            %v663 = vstv %s662
            %vm664 = vcmask 0
            %665 = vst.msk [vmem:[#allocation7] sm:$0x1] %vm664, %v663
          $region64: #{tpu_custom_call.1} parent=59 // pred_fallthru
            _
        $region60: #{tpu_custom_call.1} parent=43 // pred_fallthru
          _
        // Predicated region
        $region65: #{tpu_custom_call.1} parent=43 // pred_check
          %p666 = pneg %p200
        $region66: #{tpu_custom_call.1} parent=43 // pred_check_branch
          %668 = sbr.rel (%p666) target = $region68
        $region67: #{tpu_custom_call.1} parent=43 // pred_region
          %s670 = ssub.s32 16, 16
          %671 = vsyncadd [#allocation8], %s670
          %s673 = sshll.u32 [#allocation7], 4
          %s674 = int_to_ptr.vmem [resolvable:$true] %s673
          %676 = dma.vmem_to_hbm [thread:$0]  %s674, 16, %s6, [#allocation8]
        $region68: #{tpu_custom_call.1} parent=43 // pred_fallthru
          _
        // Predicated region
        $region69: #{tpu_custom_call.1} parent=43 // pred_check
          %p677 = pneg %p200
        $region70: #{tpu_custom_call.1} parent=43 // pred_check_branch
          %679 = sbr.rel (%p677) target = $region72
        $region71: #{tpu_custom_call.1} parent=43 // pred_region
          %680 = dma.done [#allocation8], 16
        $region72: #{tpu_custom_call.1} parent=43 // pred_fallthru
          _
      $region44: #{tpu_custom_call.1} parent=5 // pred_fallthru
        _
      %p681 = scmp.le.s32.totalorder 2, %s13
      // Predicated region
      $region73: #{tpu_custom_call.1} parent=5 // pred_check
        %p682 = pneg %p681
      $region74: #{tpu_custom_call.1} parent=5 // pred_check_branch
        %684 = sbr.rel (%p682) target = $region76
      $region75: #{tpu_custom_call.1} parent=5 // pred_region
        %s685 = ssub.s32 %s13, 2
      $region76: #{tpu_custom_call.1} parent=5 // pred_fallthru
        _
    $region6: #{tpu_custom_call.1} parent=1 // loop_footer
      %s17 = sadd.s32 1, %s13
    $region7: #{tpu_custom_call.1} parent=1 // loop_footer_branch
      %12 = sbr.rel target = $region3
    $region8: #{tpu_custom_call.1} parent=1 // loop_exit
      _
    %686 = vsyncpa [#allocation8], 1
    %s687 = scalar_lea.sflag [#allocation8], 1
    %688 = vsyncpa %s687, 1

</llo_original>
